<compile_context>
chip_gen: v7x
topology: tpu7x:2x2x1
jax: 0.10.0
libtpu: 0.0.40
codegen_flags: <defaults>
</compile_context>

<pallas_src>
import functools

import jax
import jax.numpy as jnp
from jax.experimental import pallas as pl
from jax.experimental.pallas import tpu as pltpu


# ----------------------------- Pallas kernels -------------------------------

def _seg_conv1x1_two_mats_kernel(x1_ref, x2_ref, w1_ref, w2_ref, b_ref, o_ref):
    # x1_ref: (1, C1, TM)  x2_ref: (1, C2, TM)
    # w1_ref: (K, C1)      w2_ref: (K, C2)      b_ref: (K, 1)
    # o_ref : (1, K, TM)
    acc = jnp.dot(w1_ref[...], x1_ref[0], preferred_element_type=jnp.float32)
    acc = acc + jnp.dot(w2_ref[...], x2_ref[0], preferred_element_type=jnp.float32)
    o_ref[0] = (acc + b_ref[...]).astype(o_ref.dtype)


def _seg_conv1x1_add_kernel(x1_ref, x2_ref, w1_ref, b_ref, o_ref):
    # Production path (C2 > num_classes): x2 was already contracted to K
    # channels at low resolution, so its contribution is a plain stream-add
    # (no identity matmul -- per the performance review).
    # x1_ref: (1, C1, TM)  x2_ref: (1, K, TM)  w1_ref: (K, C1)  b_ref: (K, 1)
    acc = jnp.dot(w1_ref[...], x1_ref[0], preferred_element_type=jnp.float32)
    acc = acc + x2_ref[0].astype(jnp.float32)
    o_ref[0] = (acc + b_ref[...]).astype(o_ref.dtype)


# ------------------------------ helpers --------------------------------------

def _cdiv(a, b):
    return (a + b - 1) // b


def _round_up(x, m):
    return _cdiv(x, m) * m


def _choose_tile_m(m, n_batch, tm_max, bytes_per_col,
                   vmem_block_budget=40 << 20, min_parallel_steps=4):
    """Pick the lane tile (multiple of 128): as big as possible up to tm_max,
    bounded by a VMEM budget for the double-buffered streamed blocks, while
    keeping enough grid steps to shard across both TensorCores (v7x)."""
    tm = min(tm_max, _round_up(m, 128))
    tm_budget = max(128, (vmem_block_budget // max(bytes_per_col, 1)) // 128 * 128)
    tm = max(128, min(tm, tm_budget))
    while tm > 128 and n_batch * _cdiv(m, tm) < min_parallel_steps:
        tm = max(128, _round_up(_cdiv(tm, 2), 128))
    return tm


def _conv1x1_pallas(x1f, x2f, w1, w2, bias2d, *, tm, out_dtype):
    """x1f: (N, C1, M), x2f: (N, C2e, M), w1: (K, C1), w2: (K, C2e) or None,
    bias2d: (K, 1).  Returns (N, K, M) in out_dtype.

    No padding: the grid is cdiv(M, tm); a partial edge block (if M is not a
    multiple of tm) reads unspecified tail lanes and masks its out-of-bounds
    stores -- columns are independent, so no valid output is affected.
    """
    n, c1, m = x1f.shape
    c2 = x2f.shape[1]
    k = w1.shape[0]
    grid = (n, _cdiv(m, tm))

    x1_spec = pl.BlockSpec((1, c1, tm), lambda b, i: (b, 0, i))
    x2_spec = pl.BlockSpec((1, c2, tm), lambda b, i: (b, 0, i))
    w1_spec = pl.BlockSpec((k, c1), lambda b, i: (0, 0))
    b_spec = pl.BlockSpec((k, 1), lambda b, i: (0, 0))
    out_spec = pl.BlockSpec((1, k, tm), lambda b, i: (b, 0, i))

    if w2 is None:
        kernel = _seg_conv1x1_add_kernel
        in_specs = [x1_spec, x2_spec, w1_spec, b_spec]
        operands = (x1f, x2f, w1, bias2d)
    else:
        kernel = _seg_conv1x1_two_mats_kernel
        w2_spec = pl.BlockSpec((k, c2), lambda b, i: (0, 0))
        in_specs = [x1_spec, x2_spec, w1_spec, w2_spec, b_spec]
        operands = (x1f, x2f, w1, w2, bias2d)

    # Double-buffered streamed blocks + headroom; raise the scoped VMEM limit
    # explicitly (v5e default is only 16 MiB), stay well under v7x's 64 MiB.
    block_bytes = 2 * tm * (c1 * x1f.dtype.itemsize
                            + c2 * x2f.dtype.itemsize
                            + k * jnp.dtype(out_dtype).itemsize)
    vmem_limit = int(min(max(block_bytes + (8 << 20), 32 << 20), 48 << 20))

    return pl.pallas_call(
        kernel,
        out_shape=jax.ShapeDtypeStruct((n, k, m), out_dtype),
        grid_spec=pltpu.PrefetchScalarGridSpec(
            num_scalar_prefetch=0,
            grid=grid,
            in_specs=in_specs,
            out_specs=out_spec,
        ),
        compiler_params=pltpu.CompilerParams(
            dimension_semantics=("parallel", "parallel"),
            vmem_limit_bytes=vmem_limit),
    )(*operands)


# --------------------- bilinear resize (matmul form) -------------------------

def _src_coords(out_size, in_size):
    # PyTorch bilinear, align_corners=False
    scale = in_size / out_size
    i = jnp.arange(out_size, dtype=jnp.float32)
    src = jnp.maximum((i + 0.5) * scale - 0.5, 0.0)
    i0 = jnp.minimum(jnp.floor(src).astype(jnp.int32), in_size - 1)
    i1 = jnp.minimum(i0 + 1, in_size - 1)
    lam = src - i0.astype(jnp.float32)
    return i0, i1, lam


def _interp_matrix(out_size, in_size):
    """Dense (out_size, in_size) interpolation matrix (align_corners=False)."""
    i0, i1, lam = _src_coords(out_size, in_size)
    a = (1.0 - lam)[:, None] * jax.nn.one_hot(i0, in_size, dtype=jnp.float32)
    a = a + lam[:, None] * jax.nn.one_hot(i1, in_size, dtype=jnp.float32)
    return a


def _bilinear_resize_nchw_matmul(x, out_h, out_w):
    """F.interpolate(mode='bilinear', align_corners=False) via two dense
    matmuls (MXU-friendly, no gathers).  Returns float32."""
    _, _, in_h, in_w = x.shape
    a_h = _interp_matrix(out_h, in_h)          # (out_h, in_h)
    a_w = _interp_matrix(out_w, in_w)          # (out_w, in_w)
    t = jnp.einsum('ncpq,jq->ncpj', x, a_w,
                   preferred_element_type=jnp.float32)   # upsample W
    return jnp.einsum('ncpj,ip->ncij', t, a_h,
                      preferred_element_type=jnp.float32)  # upsample H


def _bilinear_resize_nchw_gather(x, out_h, out_w):
    """Gather-based reference implementation (tests only)."""
    h0, h1, lh = _src_coords(out_h, x.shape[2])
    w0, w1, lw = _src_coords(out_w, x.shape[3])
    x_h = x[:, :, h0, :] * (1.0 - lh)[None, None, :, None] \
        + x[:, :, h1, :] * lh[None, None, :, None]
    return x_h[:, :, :, w0] * (1.0 - lw)[None, None, None, :] \
        + x_h[:, :, :, w1] * lw[None, None, None, :]


# ------------------------------ forward --------------------------------------

def _prepare_streams(x1, x2, w1, w2, bias, x2_stream_dtype):
    """Build the exact tensors streamed into the Pallas kernel."""
    n, c1, h, w = x1.shape
    c2 = x2.shape[1]
    k = w1.shape[0]
    hp = jax.lax.Precision.HIGHEST

    fuse_low_res = c2 > k
    if fuse_low_res:
        # Linearity: the 1x1-conv channel contraction commutes with the
        # bilinear resize; contract the big C2 axis at LOW resolution so only
        # K channels are interpolated / streamed at full resolution.
        y = jnp.einsum('kc,nchw->nkhw', w2, x2, precision=hp,
                       preferred_element_type=jnp.float32)
    else:
        y = x2.astype(jnp.float32)

    # Full-resolution x2 intermediate is written/streamed in bf16 (by default);
    # the cast fuses into its producer, so it costs nothing extra.
    x2u = _bilinear_resize_nchw_matmul(y, h, w).astype(x2_stream_dtype)

    m = h * w
    x1f = x1.reshape(n, c1, m)                     # NCHW flatten: free
    x2f = x2u.reshape(n, x2u.shape[1], m)          # free
    w1c = w1.astype(x1f.dtype)                     # match activation dtype (MXU)
    w2c = None if fuse_low_res else w2.astype(x2f.dtype)
    bias2d = bias.reshape(k, 1).astype(jnp.float32)
    return x1f, x2f, w1c, w2c, bias2d


@functools.partial(jax.jit,
                   static_argnames=("tm_max", "x2_stream_dtype", "out_dtype"))
def single_conv_head_forward(x1, x2, w1, w2, bias, *, tm_max=16384,
                             x2_stream_dtype=jnp.bfloat16,
                             out_dtype=jnp.float32):
    """
    x1: (N, C1, H, W)      canvas (f32 or bf16 -- streamed at its own dtype)
    x2: (N, C2, H2, W2)    RPN features
    w1: (num_classes, C1)  Conv2d weight slice for the x1 channels
    w2: (num_classes, C2)  Conv2d weight slice for the x2 channels
        (PyTorch Conv2d weight (K, C1+C2, 1, 1) reshaped to (K, C1+C2), split)
    bias: (num_classes,)
    returns {'seg_preds': (N, num_classes, H, W)}
    """
    n, c1, h, w = x1.shape
    k = w1.shape[0]
    m = h * w

    x1f, x2f, w1c, w2c, bias2d = _prepare_streams(
        x1, x2, w1, w2, bias, x2_stream_dtype)

    bytes_per_col = 2 * (c1 * x1f.dtype.itemsize
                         + x2f.shape[1] * x2f.dtype.itemsize
                         + k * jnp.dtype(out_dtype).itemsize)
    tm = _choose_tile_m(m, n, tm_max, bytes_per_col)

    out = _conv1x1_pallas(x1f, x2f, w1c, w2c, bias2d, tm=tm, out_dtype=out_dtype)
    return {'seg_preds': out.reshape(n, k, h, w)}


# ------------------------------ references -----------------------------------

def _matched_reference(x1, x2, w1, w2, bias, x2_stream_dtype=jnp.bfloat16):
    """Plain-JAX replica of the wrapper's numeric path (same streamed tensors);
    differs from the Pallas kernel only in accumulation order."""
    n, c1, h, w = x1.shape
    k = w1.shape[0]
    hp = jax.lax.Precision.HIGHEST
    x1f, x2f, w1c, w2c, bias2d = _prepare_streams(
        x1, x2, w1, w2, bias, x2_stream_dtype)
    acc = jnp.einsum('kc,ncm->nkm', w1c.astype(jnp.float32),
                     x1f.astype(jnp.float32), precision=hp)
    if w2c is None:
        acc = acc + x2f.astype(jnp.float32)
    else:
        acc = acc + jnp.einsum('kc,ncm->nkm', w2c.astype(jnp.float32),
                               x2f.astype(jnp.float32), precision=hp)
    acc = acc + bias2d[None]
    return acc.reshape(n, k, h, w)


def _exact_reference(x1, x2, weight, bias):
    """Full-f32 PyTorch-semantic reference (gather bilinear + concat + 1x1)."""
    h, w = x1.shape[-2:]
    x2u = _bilinear_resize_nchw_gather(x2.astype(jnp.float32), h, w)
    xcat = jnp.concatenate([x1.astype(jnp.float32), x2u], axis=1)
    return jnp.einsum('nchw,kc->nkhw', xcat, weight,
                      precision=jax.lax.Precision.HIGHEST) \
        + bias[None, :, None, None]


# ------------------------------ main ------------------------------------------

if __name__ == "__main__":
    keys = jax.random.split(jax.random.PRNGKey(0), 8)

    # ---- Test 1: C2 <= num_classes (two-matmul kernel path), f32 canvas ------
    N, C1, H, W = 2, 4, 16, 16
    C2, H2, W2 = 4, 8, 8
    NUM_CLASSES = 16
    CIN = C1 + C2

    x1 = jax.random.normal(keys[0], (N, C1, H, W), dtype=jnp.float32)
    x2 = jax.random.normal(keys[1], (N, C2, H2, W2), dtype=jnp.float32)
    bound = 1.0 / (CIN ** 0.5)
    weight = jax.random.uniform(keys[2], (NUM_CLASSES, CIN), jnp.float32, -bound, bound)
    bias = jax.random.uniform(keys[3], (NUM_CLASSES,), jnp.float32, -bound, bound)
    w1, w2 = weight[:, :C1], weight[:, C1:]

    out = single_conv_head_forward(x1, x2, w1, w2, bias)
    seg = jax.block_until_ready(out['seg_preds'])
    assert seg.shape == (N, NUM_CLASSES, H, W), seg.shape
    assert seg.dtype == jnp.float32

    matched = _matched_reference(x1, x2, w1, w2, bias)
    assert jnp.allclose(seg, matched, atol=1e-3, rtol=1e-3)
    exact = _exact_reference(x1, x2, weight, bias)
    assert jnp.allclose(seg, exact, atol=5e-2, rtol=5e-2)

    # ---- Test 2: C2 > num_classes (low-res contraction + stream-add kernel),
    #      bf16 canvas streaming --------------------------------------------
    Nb, C1b, Hb, Wb = 1, 8, 32, 32
    C2b, H2b, W2b = 24, 16, 16
    CINb = C1b + C2b

    x1b = jax.random.normal(keys[4], (Nb, C1b, Hb, Wb), jnp.float32).astype(jnp.bfloat16)
    x2b = jax.random.normal(keys[5], (Nb, C2b, H2b, W2b), dtype=jnp.float32)
    boundb = 1.0 / (CINb ** 0.5)
    weightb = jax.random.uniform(keys[6], (NUM_CLASSES, CINb), jnp.float32, -boundb, boundb)
    biasb = jax.random.uniform(keys[7], (NUM_CLASSES,), jnp.float32, -boundb, boundb)
    w1b, w2b = weightb[:, :C1b], weightb[:, C1b:]

    outb = single_conv_head_forward(x1b, x2b, w1b, w2b, biasb)
    segb = jax.block_until_ready(outb['seg_preds'])
    assert segb.shape == (Nb, NUM_CLASSES, Hb, Wb), segb.shape
    assert segb.dtype == jnp.float32

    matchedb = _matched_reference(x1b, x2b, w1b, w2b, biasb)
    assert jnp.allclose(segb, matchedb, atol=1e-3, rtol=1e-3)
    exactb = _exact_reference(x1b, x2b, weightb, biasb)
    assert jnp.allclose(segb, exactb, atol=5e-2, rtol=5e-2)

    print("KERNEL_OK")
</pallas_src>

<mosaic_0001>
module attributes {stable_mosaic.version = 11 : i64} {
  func.func @_seg_conv1x1_two_mats_kernel(%arg0: i32, %arg1: i32, %arg2: memref<1x4x128xf32, #tpu.memory_space<vmem>>, %arg3: memref<1x4x128xbf16, #tpu.memory_space<vmem>>, %arg4: memref<16x4xf32, #tpu.memory_space<vmem>>, %arg5: memref<16x4xbf16, #tpu.memory_space<vmem>>, %arg6: memref<16x1xf32, #tpu.memory_space<vmem>>, %arg7: memref<1x16x128xf32, #tpu.memory_space<vmem>>) attributes {dimension_semantics = [#tpu.dimension_semantics<parallel>, #tpu.dimension_semantics<parallel>], iteration_bounds = array<i64: 2, 2>, scalar_prefetch = 0 : i64, scratch_operands = 0 : i64, tpu.core_type = #tpu.core_type<tc>, window_params = [{transform_indices = @transform_0, window_bounds = array<i64: 1, 4, 128>}, {transform_indices = @transform_1, window_bounds = array<i64: 1, 4, 128>}, {pipeline_mode = #tpu.pipeline_mode<synchronous>, transform_indices = @transform_2, window_bounds = array<i64: 16, 4>}, {pipeline_mode = #tpu.pipeline_mode<synchronous>, transform_indices = @transform_3, window_bounds = array<i64: 16, 4>}, {pipeline_mode = #tpu.pipeline_mode<synchronous>, transform_indices = @transform_4, window_bounds = array<i64: 16, 1>}, {transform_indices = @transform_5, window_bounds = array<i64: 1, 16, 128>}]} {
    %c0 = arith.constant 0 : index
    %c0_0 = arith.constant 0 : index
    %0 = vector.load %arg4[%c0, %c0_0] : memref<16x4xf32, #tpu.memory_space<vmem>>, vector<16x4xf32>
    %c0_1 = arith.constant 0 : index
    %c0_2 = arith.constant 0 : index
    %c0_3 = arith.constant 0 : index
    %1 = vector.load %arg2[%c0_1, %c0_2, %c0_3] : memref<1x4x128xf32, #tpu.memory_space<vmem>>, vector<1x4x128xf32>
    %2 = vector.shape_cast %1 : vector<1x4x128xf32> to vector<4x128xf32>
    %cst = arith.constant dense<0.000000e+00> : vector<16x128xf32>
    %3 = tpu.matmul %0, %2, %cst {dimension_numbers = #tpu.dot_dimension_numbers<[1], [0], [0], [1], [0, 0, 1, 1], [], []>} : vector<16x4xf32>, vector<4x128xf32>, vector<16x128xf32> -> vector<16x128xf32>
    %c0_4 = arith.constant 0 : index
    %c0_5 = arith.constant 0 : index
    %4 = vector.load %arg5[%c0_4, %c0_5] : memref<16x4xbf16, #tpu.memory_space<vmem>>, vector<16x4xbf16>
    %c0_6 = arith.constant 0 : index
    %c0_7 = arith.constant 0 : index
    %c0_8 = arith.constant 0 : index
    %5 = vector.load %arg3[%c0_6, %c0_7, %c0_8] : memref<1x4x128xbf16, #tpu.memory_space<vmem>>, vector<1x4x128xbf16>
    %6 = vector.shape_cast %5 : vector<1x4x128xbf16> to vector<4x128xbf16>
    %cst_9 = arith.constant dense<0.000000e+00> : vector<16x128xf32>
    %7 = tpu.matmul %4, %6, %cst_9 {dimension_numbers = #tpu.dot_dimension_numbers<[1], [0], [0], [1], [0, 0, 1, 1], [], []>} : vector<16x4xbf16>, vector<4x128xbf16>, vector<16x128xf32> -> vector<16x128xf32>
    %8 = arith.addf %3, %7 : vector<16x128xf32>
    %c0_10 = arith.constant 0 : index
    %c0_11 = arith.constant 0 : index
    %9 = vector.load %arg6[%c0_10, %c0_11] : memref<16x1xf32, #tpu.memory_space<vmem>>, vector<16x1xf32>
    %10 = vector.broadcast %9 : vector<16x1xf32> to vector<16x128xf32>
    %11 = arith.addf %8, %10 : vector<16x128xf32>
    %c0_12 = arith.constant 0 : index
    %c0_13 = arith.constant 0 : index
    %c0_14 = arith.constant 0 : index
    %12 = vector.load %arg7[%c0_12, %c0_13, %c0_14] : memref<1x16x128xf32, #tpu.memory_space<vmem>>, vector<1x16x128xf32>
    %13 = vector.shape_cast %12 : vector<1x16x128xf32> to vector<16x128xf32>
    %14 = vector.shape_cast %11 : vector<16x128xf32> to vector<1x16x128xf32>
    tpu.vector_store %arg7[%c0_12, %c0_13, %c0_14], %14 {strides = array<i32>} : memref<1x16x128xf32, #tpu.memory_space<vmem>>, vector<1x16x128xf32>,
    return
  }
  func.func @transform_0(%arg0: i32, %arg1: i32) -> (i32, i32, i32) {
    %c0_i32 = arith.constant 0 : i32
    %c0_i32_0 = arith.constant 0 : i32
    return %arg0, %c0_i32, %arg1 : i32, i32, i32
  }
  func.func @transform_1(%arg0: i32, %arg1: i32) -> (i32, i32, i32) {
    %c0_i32 = arith.constant 0 : i32
    %c0_i32_0 = arith.constant 0 : i32
    return %arg0, %c0_i32, %arg1 : i32, i32, i32
  }
  func.func @transform_2(%arg0: i32, %arg1: i32) -> (i32, i32) {
    %c0_i32 = arith.constant 0 : i32
    %c0_i32_0 = arith.constant 0 : i32
    %c0_i32_1 = arith.constant 0 : i32
    return %c0_i32, %c0_i32_0 : i32, i32
  }
  func.func @transform_3(%arg0: i32, %arg1: i32) -> (i32, i32) {
    %c0_i32 = arith.constant 0 : i32
    %c0_i32_0 = arith.constant 0 : i32
    %c0_i32_1 = arith.constant 0 : i32
    return %c0_i32, %c0_i32_0 : i32, i32
  }
  func.func @transform_4(%arg0: i32, %arg1: i32) -> (i32, i32) {
    %c0_i32 = arith.constant 0 : i32
    %c0_i32_0 = arith.constant 0 : i32
    %c0_i32_1 = arith.constant 0 : i32
    return %c0_i32, %c0_i32_0 : i32, i32
  }
  func.func @transform_5(%arg0: i32, %arg1: i32) -> (i32, i32, i32) {
    %c0_i32 = arith.constant 0 : i32
    %c0_i32_0 = arith.constant 0 : i32
    return %arg0, %c0_i32, %arg1 : i32, i32, i32
  }
}

</mosaic_0001>

<llo_original>
// kernel: single_conv_head_forward.1
$region0: #{single_conv_head_forward.1}
  #allocation0 [shape = 'u32[]', space=smem, size = 0x4, offset = 0x4, fixed_abs, tag = 'smem constant byte address 0x4 - core index']
  #allocation1 [shape = 'u32[144,128]{1,0:T(1,128)}', space=vmem, size = 0x12000, scoped, tag = 'internal scratch']
  %s0 = inlined_call_operand.vmem [shape: f32[2,4,256], index: 0, kind: input, shape index: {}]
  %s1 = inlined_call_operand.vmem [shape: bf16[2,4,256], index: 1, kind: input, shape index: {}]
  %s2 = inlined_call_operand.vmem [shape: f32[16,4], index: 2, kind: input, shape index: {}]
  %s3 = inlined_call_operand.vmem [shape: bf16[16,4], index: 3, kind: input, shape index: {}]
  %s4 = inlined_call_operand.vmem [shape: f32[16,1], index: 4, kind: input, shape index: {}]
  %s5 = inlined_call_operand.vmem [shape: f32[2,16,256], index: 5, kind: output, shape index: {}]
  %s6 = sld [smem:[#allocation0]]
  $region87: #{single_conv_head_forward.1} parent=0
    _
  %s8 = ssub.s32 1, %s6
  %s9 = scalar_select 0, %s8, %s6
  $region1: #{single_conv_head_forward.1} parent=0
    #allocation2 [shape = 'u8[16384]{0}', space=vmem, size = 0x4000, scoped, tag = 'output window, operand 0']
    loop: start=0, step=1, limit=6
    $region2: #{single_conv_head_forward.1} parent=1 // loop_pre_header
      _
    $region3: #{single_conv_head_forward.1} parent=1 // loop_header
      %s11 = sphi 0, %s15
      %p12 = scmp.ge.s32.totalorder %s11, 6
      %s18 = sphi 0, %s30
      %s19 = sphi 0, %s26
      %s20 = sphi 0, %s18
      %s21 = sphi 0, %s19
      %s22 = sphi 0, %s20
      %s23 = sphi 0, %s21
      %s35 = sphi 0, %s37
      %s38 = sphi 0, %s35
      %s39 = sphi 0, %s38
      %s55 = sphi 0, %s39
      %s63 = sphi 0, %s65
      %s66 = sphi 0, %s63
      %s67 = sphi 0, %s66
      %s83 = sphi 0, %s67
      %s87 = sphi 0, %s87
      %s89 = sphi 0, %s87
      %s90 = sphi 0, %s89
      %s104 = sphi 0, %s90
      %s108 = sphi 0, %s108
      %s110 = sphi 0, %s108
      %s111 = sphi 0, %s110
      %s125 = sphi 0, %s111
      %s129 = sphi 0, %s129
      %s131 = sphi 0, %s129
      %s132 = sphi 0, %s131
      %s146 = sphi 0, %s132
      %s154 = sphi 0, %s156
      %s157 = sphi 0, %s154
      %s158 = sphi 0, %s157
      %s174 = sphi 0, %s158
    $region4: #{single_conv_head_forward.1} parent=1 // loop_header_branch
      %14 = sbr.rel (%p12) target = $region8
    $region5: #{single_conv_head_forward.1} parent=1 // loop_body
      %s16 = ssub.s32 %s11, 1
      %s17 = ssub.s32 %s11, 2
      %s24 = sadd.s32 1, %s19
      %p25 = scmp.ge.s32.totalorder %s24, 2
      %s26 = scalar_select %p25, 0, %s24
      %s27 = sadd.s32 1, %s18
      %s28 = scalar_select %p25, %s27, %s18
      %p29 = scmp.ge.s32.totalorder %s28, 2
      %s30 = scalar_select %p29, 0, %s28
      %s31 = ssub.s32 %s18, %s30
      %s32 = ssub.s32 %s19, %s26
      %s33 = sor.u32 %s31, %s32
      %p34 = scmp.eq.s32.totalorder %s33, 0
      %s36 = sadd.s32 %s35, 1
      %s37 = scalar_select %p34, %s35, %s36
      %p40 = pneg %p34
      %p41 = scmp.eq.s32.totalorder %s11, 3
      %p42 = por %p40, %p41
      %p43 = scmp.ne.s32.totalorder %s35, %s38
      %p44 = scmp.eq.s32.totalorder %s11, 0
      %p45 = por %p43, %p44
      %p46 = scmp.ne.s32.totalorder %s35, %s38
      %p47 = scmp.eq.s32.totalorder %s16, 3
      %p48 = por %p46, %p47
      %p49 = scmp.ne.s32.totalorder %s38, %s39
      %p50 = scmp.eq.s32.totalorder %s16, 0
      %p51 = por %p49, %p50
      %p52 = scmp.ne.s32.totalorder %s38, %s39
      %p53 = scmp.eq.s32.totalorder %s17, 3
      %p54 = por %p52, %p53
      %p56 = scmp.ne.s32.totalorder %s39, %s55
      %p57 = scmp.eq.s32.totalorder %s17, 0
      %p58 = por %p56, %p57
      %s59 = ssub.s32 %s18, %s30
      %s60 = ssub.s32 %s19, %s26
      %s61 = sor.u32 %s59, %s60
      %p62 = scmp.eq.s32.totalorder %s61, 0
      %s64 = sadd.s32 %s63, 1
      %s65 = scalar_select %p62, %s63, %s64
      %p68 = pneg %p62
      %p69 = scmp.eq.s32.totalorder %s11, 3
      %p70 = por %p68, %p69
      %p71 = scmp.ne.s32.totalorder %s63, %s66
      %p72 = scmp.eq.s32.totalorder %s11, 0
      %p73 = por %p71, %p72
      %p74 = scmp.ne.s32.totalorder %s63, %s66
      %p75 = scmp.eq.s32.totalorder %s16, 3
      %p76 = por %p74, %p75
      %p77 = scmp.ne.s32.totalorder %s66, %s67
      %p78 = scmp.eq.s32.totalorder %s16, 0
      %p79 = por %p77, %p78
      %p80 = scmp.ne.s32.totalorder %s66, %s67
      %p81 = scmp.eq.s32.totalorder %s17, 3
      %p82 = por %p80, %p81
      %p84 = scmp.ne.s32.totalorder %s67, %s83
      %p85 = scmp.eq.s32.totalorder %s17, 0
      %p86 = por %p84, %p85
      %s88 = sadd.s32 %s87, 1
      %p91 = scmp.eq.s32.totalorder %s11, 3
      %p92 = scmp.ne.s32.totalorder %s87, %s89
      %p93 = scmp.eq.s32.totalorder %s11, 0
      %p94 = por %p92, %p93
      %p95 = scmp.ne.s32.totalorder %s87, %s89
      %p96 = scmp.eq.s32.totalorder %s16, 3
      %p97 = por %p95, %p96
      %p98 = scmp.ne.s32.totalorder %s89, %s90
      %p99 = scmp.eq.s32.totalorder %s16, 0
      %p100 = por %p98, %p99
      %p101 = scmp.ne.s32.totalorder %s89, %s90
      %p102 = scmp.eq.s32.totalorder %s17, 3
      %p103 = por %p101, %p102
      %p105 = scmp.ne.s32.totalorder %s90, %s104
      %p106 = scmp.eq.s32.totalorder %s17, 0
      %p107 = por %p105, %p106
      %s109 = sadd.s32 %s108, 1
      %p112 = scmp.eq.s32.totalorder %s11, 3
      %p113 = scmp.ne.s32.totalorder %s108, %s110
      %p114 = scmp.eq.s32.totalorder %s11, 0
      %p115 = por %p113, %p114
      %p116 = scmp.ne.s32.totalorder %s108, %s110
      %p117 = scmp.eq.s32.totalorder %s16, 3
      %p118 = por %p116, %p117
      %p119 = scmp.ne.s32.totalorder %s110, %s111
      %p120 = scmp.eq.s32.totalorder %s16, 0
      %p121 = por %p119, %p120
      %p122 = scmp.ne.s32.totalorder %s110, %s111
      %p123 = scmp.eq.s32.totalorder %s17, 3
      %p124 = por %p122, %p123
      %p126 = scmp.ne.s32.totalorder %s111, %s125
      %p127 = scmp.eq.s32.totalorder %s17, 0
      %p128 = por %p126, %p127
      %s130 = sadd.s32 %s129, 1
      %p133 = scmp.eq.s32.totalorder %s11, 3
      %p134 = scmp.ne.s32.totalorder %s129, %s131
      %p135 = scmp.eq.s32.totalorder %s11, 0
      %p136 = por %p134, %p135
      %p137 = scmp.ne.s32.totalorder %s129, %s131
      %p138 = scmp.eq.s32.totalorder %s16, 3
      %p139 = por %p137, %p138
      %p140 = scmp.ne.s32.totalorder %s131, %s132
      %p141 = scmp.eq.s32.totalorder %s16, 0
      %p142 = por %p140, %p141
      %p143 = scmp.ne.s32.totalorder %s131, %s132
      %p144 = scmp.eq.s32.totalorder %s17, 3
      %p145 = por %p143, %p144
      %p147 = scmp.ne.s32.totalorder %s132, %s146
      %p148 = scmp.eq.s32.totalorder %s17, 0
      %p149 = por %p147, %p148
      %s150 = ssub.s32 %s18, %s30
      %s151 = ssub.s32 %s19, %s26
      %s152 = sor.u32 %s150, %s151
      %p153 = scmp.eq.s32.totalorder %s152, 0
      %s155 = sadd.s32 %s154, 1
      %s156 = scalar_select %p153, %s154, %s155
      %p159 = pneg %p153
      %p160 = scmp.eq.s32.totalorder %s11, 3
      %p161 = por %p159, %p160
      %p162 = scmp.ne.s32.totalorder %s154, %s157
      %p163 = scmp.eq.s32.totalorder %s11, 0
      %p164 = por %p162, %p163
      %p165 = scmp.ne.s32.totalorder %s154, %s157
      %p166 = scmp.eq.s32.totalorder %s16, 3
      %p167 = por %p165, %p166
      %p168 = scmp.ne.s32.totalorder %s157, %s158
      %p169 = scmp.eq.s32.totalorder %s16, 0
      %p170 = por %p168, %p169
      %p171 = scmp.ne.s32.totalorder %s157, %s158
      %p172 = scmp.eq.s32.totalorder %s17, 3
      %p173 = por %p171, %p172
      %p175 = scmp.ne.s32.totalorder %s158, %s174
      %p176 = scmp.eq.s32.totalorder %s17, 0
      %p177 = por %p175, %p176
      %p178 = scmp.le.s32.totalorder 1, %s11
      %p179 = scmp.lt.s32.totalorder %s11, 5
      %p180 = pnand %p178, %p179
      %p181 = pneg %p180
      // Predicated region
      $region9: #{single_conv_head_forward.1} parent=5 // pred_check
        _
      $region10: #{single_conv_head_forward.1} parent=5 // pred_check_branch
        %183 = sbr.rel (%p180) target = $region12
      $region11: #{single_conv_head_forward.1} parent=5 // pred_region
        %s184 = ssub.s32 %s11, 1
        // Predicated region
        $region13: #{single_conv_head_forward.1} parent=11 // pred_check
          %p185 = pneg %p100
        $region14: #{single_conv_head_forward.1} parent=11 // pred_check_branch
          %187 = sbr.rel (%p185) target = $region16
        $region15: #{single_conv_head_forward.1} parent=11 // pred_region
          _
        $region16: #{single_conv_head_forward.1} parent=11 // pred_fallthru
          _
        // Predicated region
        $region17: #{single_conv_head_forward.1} parent=11 // pred_check
          %p188 = pneg %p121
        $region18: #{single_conv_head_forward.1} parent=11 // pred_check_branch
          %190 = sbr.rel (%p188) target = $region20
        $region19: #{single_conv_head_forward.1} parent=11 // pred_region
          _
        $region20: #{single_conv_head_forward.1} parent=11 // pred_fallthru
          _
        // Predicated region
        $region21: #{single_conv_head_forward.1} parent=11 // pred_check
          %p191 = pneg %p142
        $region22: #{single_conv_head_forward.1} parent=11 // pred_check_branch
          %193 = sbr.rel (%p191) target = $region24
        $region23: #{single_conv_head_forward.1} parent=11 // pred_region
          _
        $region24: #{single_conv_head_forward.1} parent=11 // pred_fallthru
          _
      $region12: #{single_conv_head_forward.1} parent=5 // pred_fallthru
        _
      %p194 = scmp.lt.s32.totalorder %s11, 4
      // Predicated region
      $region25: #{single_conv_head_forward.1} parent=5 // pred_check
        %p195 = pneg %p194
      $region26: #{single_conv_head_forward.1} parent=5 // pred_check_branch
        %197 = sbr.rel (%p195) target = $region28
      $region27: #{single_conv_head_forward.1} parent=5 // pred_region
        // Predicated region
        $region29: #{single_conv_head_forward.1} parent=27 // pred_check
          %p198 = pneg %p45
        $region30: #{single_conv_head_forward.1} parent=27 // pred_check_branch
          %200 = sbr.rel (%p198) target = $region32
        $region31: #{single_conv_head_forward.1} parent=27 // pred_region
          %p201 = scmp.lt.s32.totalorder %s18, 1
          %s202 = scalar_select %p201, %s18, 1
          %p203 = scmp.lt.s32.totalorder %s19, 1
          %s204 = scalar_select %p203, %s19, 1
          %s205 = smul.addr %s202, 2
          %s206 = sadd.s32 %s204, %s205
          %s207 = smul.addr %s206, 4
          %s208 = scalar_lea.vmem %s0, %s207
        $region32: #{single_conv_head_forward.1} parent=27 // pred_fallthru
          _
        // Predicated region
        $region33: #{single_conv_head_forward.1} parent=27 // pred_check
          %p209 = pneg %p73
        $region34: #{single_conv_head_forward.1} parent=27 // pred_check_branch
          %211 = sbr.rel (%p209) target = $region36
        $region35: #{single_conv_head_forward.1} parent=27 // pred_region
          %p212 = scmp.lt.s32.totalorder %s18, 1
          %s213 = scalar_select %p212, %s18, 1
          %p214 = scmp.lt.s32.totalorder %s19, 1
          %s215 = scalar_select %p214, %s19, 1
          %s216 = smul.addr %s213, 2
          %s217 = sadd.s32 %s215, %s216
          %s218 = smul.addr %s217, 2
          %s219 = scalar_lea.vmem %s1, %s218
        $region36: #{single_conv_head_forward.1} parent=27 // pred_fallthru
          _
      $region28: #{single_conv_head_forward.1} parent=5 // pred_fallthru
        _
      %p220 = scmp.le.s32.totalorder 1, %s11
      %p221 = scmp.lt.s32.totalorder %s11, 5
      %p222 = pnand %p220, %p221
      %p223 = pneg %p222
      // Predicated region
      $region37: #{single_conv_head_forward.1} parent=5 // pred_check
        _
      $region38: #{single_conv_head_forward.1} parent=5 // pred_check_branch
        %225 = sbr.rel (%p222) target = $region40
      $region39: #{single_conv_head_forward.1} parent=5 // pred_region
        %s226 = ssub.s32 %s11, 1
        %p227 = scmp.lt.s32.totalorder %s20, 1
        %s228 = scalar_select %p227, %s20, 1
        %p229 = scmp.lt.s32.totalorder %s21, 1
        %s230 = scalar_select %p229, %s21, 1
        %s231 = smul.addr %s228, 2
        %s232 = sadd.s32 %s230, %s231
        %s233 = smul.addr %s232, 4
        %s234 = scalar_lea.vmem %s0, %s233
        %p235 = pneg %p51
        %p236 = pneg %p48
        %p237 = scmp.lt.s32.totalorder %s20, 1
        %s238 = scalar_select %p237, %s20, 1
        %p239 = scmp.lt.s32.totalorder %s21, 1
        %s240 = scalar_select %p239, %s21, 1
        %s241 = smul.addr %s238, 2
        %s242 = sadd.s32 %s240, %s241
        %s243 = smul.addr %s242, 2
        %s244 = scalar_lea.vmem %s1, %s243
        %p245 = pneg %p79
        %p246 = pneg %p76
        %p247 = pneg %p100
        %p248 = pneg %p97
        %p249 = pneg %p121
        %p250 = pneg %p118
        %p251 = pneg %p142
        %p252 = pneg %p139
        %p253 = pneg %p170
        %p254 = pneg %p167
        %s255 = sand.u32 %s157, 1
        %s256 = sand.u32 %s157, 1
        %s257 = smul.addr %s256, 16
        %s258 = scalar_lea.vmem [#allocation2], %s257
        %p259 = scmp.lt.s32.totalorder %s20, 1
        %s260 = scalar_select %p259, %s20, 1
        %p261 = scmp.lt.s32.totalorder %s21, 1
        %s262 = scalar_select %p261, %s21, 1
        %s263 = smul.addr %s260, 2
        %s264 = sadd.s32 %s262, %s263
        %s265 = smul.addr %s264, 4
        %s266 = scalar_lea.vmem %s0, %s265
        %p267 = scmp.lt.s32.totalorder %s20, 1
        %s268 = scalar_select %p267, %s20, 1
        %p269 = scmp.lt.s32.totalorder %s21, 1
        %s270 = scalar_select %p269, %s21, 1
        %s271 = smul.addr %s268, 2
        %s272 = sadd.s32 %s270, %s271
        %s273 = smul.addr %s272, 2
        %s274 = scalar_lea.vmem %s1, %s273
        %v276 = vld [vmem:[%s2] sm:$0xff]
        %v277 = vld [vmem:[%s2 + $0x8] sm:$0xff]
        %v278 = vld [vmem:[%s266] sm:$0xf]
        %v279 = vld [vmem:[%s3] sm:$0xf]
        %v280 = vld [vmem:[%s3 + $0x4] sm:$0xf]
        %v281 = vld [vmem:[%s274] sm:$0x3]
        %v284 = vunpack.c.l.b16 %v279
        %v285 = vunpack.c.l.b16 %v280
        %v286 = vpack.c.b16 %v285, %v284
        %vm287 = vcmask 31744
        %v289 = vsel %vm287, %v286, 0
        %vm291 = vcmask 1041408
        %v293 = vsel %vm291, %v281, 0
        %295 = vmatprep.subr.bf16.mxu0 0
        %296 = vmatpush1.bf16.msra.mxu0 %v293
        %297 = vmatprep.subr.bf16.mxu0 0
        %298 = vmatpush1.bf16.msra.mxu0 0
        %299 = vmatprep.subr.bf16.mxu0 0
        %300 = vmatpush1.bf16.msra.mxu0 0
        %301 = vmatprep.subr.bf16.mxu0 0
        %302 = vmatpush1.bf16.msra.mxu0 0
        %303 = vmatprep.subr.bf16.mxu0 0
        %304 = vmatpush1.bf16.msra.mxu0 0
        %305 = vmatprep.subr.bf16.mxu0 0
        %306 = vmatpush1.bf16.msra.mxu0 0
        %307 = vmatprep.subr.bf16.mxu0 0
        %308 = vmatpush1.bf16.msra.mxu0 0
        %309 = vmatprep.subr.bf16.mxu0 0
        %310 = vmatpush1.bf16.msra.mxu0 0
        %311 = vmatprep.subr.bf16.mxu0 0
        %312 = vmatpush1.bf16.msra.mxu0 0
        %313 = vmatprep.subr.bf16.mxu0 0
        %314 = vmatpush1.bf16.msra.mxu0 0
        %315 = vmatprep.subr.bf16.mxu0 0
        %316 = vmatpush1.bf16.msra.mxu0 0
        %317 = vmatprep.subr.bf16.mxu0 0
        %318 = vmatpush1.bf16.msra.mxu0 0
        %319 = vmatprep.subr.bf16.mxu0 0
        %320 = vmatpush1.bf16.msra.mxu0 0
        %321 = vmatprep.subr.bf16.mxu0 0
        %322 = vmatpush1.bf16.msra.mxu0 0
        %323 = vmatprep.subr.bf16.mxu0 0
        %324 = vmatpush1.bf16.msra.mxu0 0
        %325 = vmatprep.subr.bf16.mxu0 0
        %326 = vmatpush1.bf16.msra.mxu0 0
        %327 = vmatprep.mubr.bf16.mxu0 0
        %328 = vmatmul.mubr.bf16.gmra.mrb[0].mxu0 %v289
        %v329 = vpop.f32.mrb[0].mxu0
        %v330 = vadd.f32 0.0, %v329
        %v331 = vpop.f32.mrb[0].mxu0
        %v332 = vpop.f32.mrb[0].mxu0
        %v333 = vadd.f32 0.0, %v332
        %v334 = vpop.f32.mrb[0].mxu0
        %335 = vdwg.mxu0
        %v337 = vsel %vm287, %v276, 0
        %v340 = vsel %vm287, %v277, 0
        %vm342 = vcmask 1043456
        %v344 = vsel %vm342, %v278, 0
        %346 = vmatprep.subr.mxu0 0.0
        %347 = vmatpush1.msra.mxu0 %v344
        %348 = vmatprep.subr.mxu0 0.0
        %349 = vmatpush1.msra.mxu0 0.0
        %350 = vmatprep.subr.mxu0 0.0
        %351 = vmatpush1.msra.mxu0 0.0
        %352 = vmatprep.subr.mxu0 0.0
        %353 = vmatpush1.msra.mxu0 0.0
        %354 = vmatprep.subr.mxu0 0.0
        %355 = vmatpush1.msra.mxu0 0.0
        %356 = vmatprep.subr.mxu0 0.0
        %357 = vmatpush1.msra.mxu0 0.0
        %358 = vmatprep.subr.mxu0 0.0
        %359 = vmatpush1.msra.mxu0 0.0
        %360 = vmatprep.subr.mxu0 0.0
        %361 = vmatpush1.msra.mxu0 0.0
        %362 = vmatprep.subr.mxu0 0.0
        %363 = vmatpush1.msra.mxu0 0.0
        %364 = vmatprep.subr.mxu0 0.0
        %365 = vmatpush1.msra.mxu0 0.0
        %366 = vmatprep.subr.mxu0 0.0
        %367 = vmatpush1.msra.mxu0 0.0
        %368 = vmatprep.subr.mxu0 0.0
        %369 = vmatpush1.msra.mxu0 0.0
        %370 = vmatprep.subr.mxu0 0.0
        %371 = vmatpush1.msra.mxu0 0.0
        %372 = vmatprep.subr.mxu0 0.0
        %373 = vmatpush1.msra.mxu0 0.0
        %374 = vmatprep.subr.mxu0 0.0
        %375 = vmatpush1.msra.mxu0 0.0
        %376 = vmatprep.subr.mxu0 0.0
        %377 = vmatpush1.msra.mxu0 0.0
        %378 = vmatprep.subr.mxu0 0.0
        %379 = vmatpush1.msra.mxu0 0.0
        %380 = vmatprep.subr.mxu0 0.0
        %381 = vmatpush1.msra.mxu0 0.0
        %382 = vmatprep.subr.mxu0 0.0
        %383 = vmatpush1.msra.mxu0 0.0
        %384 = vmatprep.subr.mxu0 0.0
        %385 = vmatpush1.msra.mxu0 0.0
        %386 = vmatprep.subr.mxu0 0.0
        %387 = vmatpush1.msra.mxu0 0.0
        %388 = vmatprep.subr.mxu0 0.0
        %389 = vmatpush1.msra.mxu0 0.0
        %390 = vmatprep.subr.mxu0 0.0
        %391 = vmatpush1.msra.mxu0 0.0
        %392 = vmatprep.subr.mxu0 0.0
        %393 = vmatpush1.msra.mxu0 0.0
        %394 = vmatprep.subr.mxu0 0.0
        %395 = vmatpush1.msra.mxu0 0.0
        %396 = vmatprep.subr.mxu0 0.0
        %397 = vmatpush1.msra.mxu0 0.0
        %398 = vmatprep.subr.mxu0 0.0
        %399 = vmatpush1.msra.mxu0 0.0
        %400 = vmatprep.subr.mxu0 0.0
        %401 = vmatpush1.msra.mxu0 0.0
        %402 = vmatprep.subr.mxu0 0.0
        %403 = vmatpush1.msra.mxu0 0.0
        %404 = vmatprep.subr.mxu0 0.0
        %405 = vmatpush1.msra.mxu0 0.0
        %406 = vmatprep.subr.mxu0 0.0
        %407 = vmatpush1.msra.mxu0 0.0
        %408 = vmatprep.subr.mxu0 0.0
        %409 = vmatpush1.msra.mxu0 0.0
        %410 = vmatprep.mubr.f32.mxu0 0.0
        %411 = vmatmul.mubr.f32.gmra.mrb[0].mxu0 %v337
        %v412 = vpop.f32.mrb[0].mxu0
        %v413 = vadd.f32 %v330, %v412
        %v414 = vpop.f32.mrb[0].mxu0
        %415 = vmatprep.mubr.f32.mxu0 0.0
        %416 = vmatmul.mubr.f32.gmra.mrb[0].mxu0 %v340
        %v417 = vpop.f32.mrb[0].mxu0
        %v418 = vadd.f32 %v333, %v417
        %v419 = vpop.f32.mrb[0].mxu0
        %420 = vdwg.mxu0
        %v421 = vld [vmem:[%s4] sm:$0xff]
        %v422 = vld [vmem:[%s4 + $0x8] sm:$0xff]
        %424 = vset.pattern.permute.xlu0 0
        %425 = vperm.xlu0 %424, %v421
        %v426 = vpop.permute.xlu0 %425
        %429 = vset.pattern.permute.xlu0 0
        %430 = vperm.xlu0 %429, %v422
        %v431 = vpop.permute.xlu0 %430
        %v433 = vadd.f32 %v413, %v426
        %v434 = vadd.f32 %v418, %v431
        %435 = vst [vmem:[%s258] sm:$0xff] %v433
        %436 = vst [vmem:[%s258 + $0x8] sm:$0xff] %v434
        %s437 = sand.u32 %s157, 1
        %s438 = sand.u32 %s157, 1
        %s439 = smul.addr %s438, 16
        %s440 = scalar_lea.vmem [#allocation2], %s439
        // Predicated region
        $region41: #{single_conv_head_forward.1} parent=39 // pred_check
          %p441 = pneg %p167
        $region42: #{single_conv_head_forward.1} parent=39 // pred_check_branch
          %443 = sbr.rel (%p441) target = $region44
        $region43: #{single_conv_head_forward.1} parent=39 // pred_region
          %s444 = smul.addr %s20, 4
          %s445 = sadd.s32 %s21, %s444
          %s446 = smul.addr %s445, 8
          %s447 = scalar_lea.vmem %s5, %s446
          // Predicated region
          $region45: #{single_conv_head_forward.1} parent=43 // pred_check
            _
          $region46: #{single_conv_head_forward.1} parent=43 // pred_check_branch
            %449 = sbr.rel (0) target = $region48
          $region47: #{single_conv_head_forward.1} parent=43 // pred_region
            // Predicated region
            $region49: #{single_conv_head_forward.1} parent=47 // pred_check
              _
            $region50: #{single_conv_head_forward.1} parent=47 // pred_check_branch
              %451 = sbr.rel (0) target = $region52
            $region51: #{single_conv_head_forward.1} parent=47 // pred_region
              // Predicated region
              $region64: #{single_conv_head_forward.1} parent=51 // pred_check
                _
              $region65: #{single_conv_head_forward.1} parent=51 // pred_check_branch
                %468 = sbr.rel (0) target = $region67
              $region66: #{single_conv_head_forward.1} parent=51 // pred_region
                loop: start=0, step=1, limit=1
                $region68: #{single_conv_head_forward.1} parent=66 // loop_pre_header
                  _
                $region69: #{single_conv_head_forward.1} parent=66 // loop_header
                  %s470 = sphi 0, %s474
                  %p471 = scmp.ge.s32.totalorder %s470, 1
                  %s475 = sphi %s440, %s440
                  %s476 = sphi %s447, %s447
                $region70: #{single_conv_head_forward.1} parent=66 // loop_header_branch
                  %473 = sbr.rel (%p471) target = $region74
                $region71: #{single_conv_head_forward.1} parent=66 // loop_body
                  %v477 = vld [vmem:[%s475] sm:$0xff]
                  %478 = vst [vmem:[%s476] sm:$0xff] %v477
                  %v479 = vld [vmem:[%s475 + $0x8] sm:$0xff]
                  %480 = vst [vmem:[%s476 + $0x10] sm:$0xff] %v479
                $region72: #{single_conv_head_forward.1} parent=66 // loop_footer
                  %s474 = sadd.s32 1, %s470
                $region73: #{single_conv_head_forward.1} parent=66 // loop_footer_branch
                  %469 = sbr.rel target = $region69
                $region74: #{single_conv_head_forward.1} parent=66 // loop_exit
                  _
              $region67: #{single_conv_head_forward.1} parent=51 // pred_fallthru
                _
              // Predicated region
              $region75: #{single_conv_head_forward.1} parent=51 // pred_check
                _
              $region76: #{single_conv_head_forward.1} parent=51 // pred_check_branch
                %482 = sbr.rel target = $region78
              $region77: #{single_conv_head_forward.1} parent=51 // pred_region
                _
              $region78: #{single_conv_head_forward.1} parent=51 // pred_fallthru
                _
            $region52: #{single_conv_head_forward.1} parent=47 // pred_fallthru
              _
            // Predicated region
            $region53: #{single_conv_head_forward.1} parent=47 // pred_check
              _
            $region54: #{single_conv_head_forward.1} parent=47 // pred_check_branch
              %453 = sbr.rel target = $region56
            $region55: #{single_conv_head_forward.1} parent=47 // pred_region
              loop: start=0, step=1, limit=1
              $region57: #{single_conv_head_forward.1} parent=55 // loop_pre_header
                _
              $region58: #{single_conv_head_forward.1} parent=55 // loop_header
                %s456 = sphi 0, %s460
                %p457 = scmp.ge.s32.totalorder %s456, 1
                %s461 = sphi %s440, %s440
                %s462 = sphi %s447, %s447
              $region59: #{single_conv_head_forward.1} parent=55 // loop_header_branch
                %459 = sbr.rel (%p457) target = $region63
              $region60: #{single_conv_head_forward.1} parent=55 // loop_body
                %v463 = vld [vmem:[%s461] sm:$0xff]
                %464 = vst [vmem:[%s462] sm:$0xff] %v463
                %v465 = vld [vmem:[%s461 + $0x8] sm:$0xff]
                %466 = vst [vmem:[%s462 + $0x10] sm:$0xff] %v465
              $region61: #{single_conv_head_forward.1} parent=55 // loop_footer
                %s460 = sadd.s32 1, %s456
              $region62: #{single_conv_head_forward.1} parent=55 // loop_footer_branch
                %455 = sbr.rel target = $region58
              $region63: #{single_conv_head_forward.1} parent=55 // loop_exit
                _
            $region56: #{single_conv_head_forward.1} parent=47 // pred_fallthru
              _
          $region48: #{single_conv_head_forward.1} parent=43 // pred_fallthru
            _
          %483 = vnop
        $region44: #{single_conv_head_forward.1} parent=39 // pred_fallthru
          _
      $region40: #{single_conv_head_forward.1} parent=5 // pred_fallthru
        _
      %p484 = scmp.le.s32.totalorder 2, %s11
      // Predicated region
      $region79: #{single_conv_head_forward.1} parent=5 // pred_check
        %p485 = pneg %p484
      $region80: #{single_conv_head_forward.1} parent=5 // pred_check_branch
        %487 = sbr.rel (%p485) target = $region82
      $region81: #{single_conv_head_forward.1} parent=5 // pred_region
        %s488 = ssub.s32 %s11, 2
        // Predicated region
        $region83: #{single_conv_head_forward.1} parent=81 // pred_check
          %p489 = pneg %p173
        $region84: #{single_conv_head_forward.1} parent=81 // pred_check_branch
          %491 = sbr.rel (%p489) target = $region86
        $region85: #{single_conv_head_forward.1} parent=81 // pred_region
          %s492 = sand.u32 %s158, 1
          %s493 = sand.u32 %s158, 1
          %s494 = smul.addr %s493, 16
          %s495 = scalar_lea.vmem [#allocation2], %s494
        $region86: #{single_conv_head_forward.1} parent=81 // pred_fallthru
          _
      $region82: #{single_conv_head_forward.1} parent=5 // pred_fallthru
        _
    $region6: #{single_conv_head_forward.1} parent=1 // loop_footer
      %s15 = sadd.s32 1, %s11
    $region7: #{single_conv_head_forward.1} parent=1 // loop_footer_branch
      %10 = sbr.rel target = $region3
    $region8: #{single_conv_head_forward.1} parent=1 // loop_exit
      _

</llo_original>
